<compile_context>
chip_gen: v7x
topology: tpu7x:2x2x1
jax: 0.10.0
libtpu: 0.0.40
codegen_flags: <defaults>
</compile_context>

<pallas_src>
import functools

import jax
import jax.numpy as jnp
from jax.experimental import pallas as pl
from jax.experimental.pallas import tpu as pltpu

HIDDEN = 256


def _round_up(x, m):
    return (x + m - 1) // m * m


def _critic_kernel(sa_ref,
                   w14_ref, b14_ref,
                   w2_ref, b2_ref, w5_ref, b5_ref,
                   w3r_ref, b3_ref, w6r_ref, b6_ref,
                   out_ref):
    """Twin-Q forward for one batch tile.  Weights are VMEM-resident."""
    h = HIDDEN
    sa = sa_ref[...].astype(jnp.bfloat16)

    # Fused first layers of both heads: one K=16 matmul against [w1 || w4]
    # (bf16 MXU operands, f32 accumulate), bias + ReLU in f32 on the VPU.
    h0 = (jnp.dot(sa, w14_ref[...], preferred_element_type=jnp.float32)
          + b14_ref[...])
    h0 = jnp.maximum(h0, 0.0)

    h1 = h0[:, :h].astype(jnp.bfloat16)              # Q1 branch input
    h2 = h0[:, h:].astype(jnp.bfloat16)              # Q2 branch input

    g1 = jnp.maximum(
        jnp.dot(h1, w2_ref[...], preferred_element_type=jnp.float32)
        + b2_ref[...], 0.0)
    g2 = jnp.maximum(
        jnp.dot(h2, w5_ref[...], preferred_element_type=jnp.float32)
        + b5_ref[...], 0.0)

    # Final 256 -> 1 projections on the VPU + XLU (cross-lane reduce) instead
    # of burning N-padded MXU passes; weights come in as f32 (1, 256) rows.
    q1 = jnp.sum(g1 * w3r_ref[...], axis=-1, keepdims=True) + b3_ref[...]
    q2 = jnp.sum(g2 * w6r_ref[...], axis=-1, keepdims=True) + b6_ref[...]

    # Single (TILE_B, 2) store: column 0 = q1, column 1 = q2.
    out_ref[...] = jnp.concatenate([q1, q2], axis=-1).astype(out_ref.dtype)


def prepare_critic_params(params):
    """Repack PyTorch-layout [in, out] params into the kernel's fused layout."""
    (w1, b1, w2, b2, w3, b3, w4, b4, w5, b5, w6, b6) = params
    w14 = jnp.concatenate([w1, w4], axis=1).astype(jnp.bfloat16)  # (in, 2H) bf16
    b14 = jnp.concatenate([b1, b4], axis=1)                       # (1, 2H) f32
    return (w14, b14,
            w2.astype(jnp.bfloat16), b2,
            w5.astype(jnp.bfloat16), b5,
            w3.T, b3,                                             # (1, H) f32 row
            w6.T, b6)                                             # (1, H) f32 row


@functools.partial(jax.jit, static_argnames=("tile_b",))
def critic_forward(state, action, prep, *, tile_b=2048):
    """Equivalent of Critic.forward(state, action) -> (q1, q2)."""
    B, state_dim = state.shape
    action_dim = action.shape[1]
    in_dim = state_dim + action_dim

    # One wrapper-side concat so layer 1 is a single K=in_dim matmul.
    sa = jnp.concatenate([state, action], axis=1)

    b8 = _round_up(B, 8)
    tb = min(tile_b, b8)
    # Keep >= 2 grid steps when there is enough work so both TensorCores on a
    # v7x chip get a slice of the "parallel" batch axis.
    if b8 >= 16:
        tb = min(tb, _round_up(pl.cdiv(b8, 2), 8))
    b_pad = _round_up(B, tb)
    if b_pad != B:
        sa = jnp.pad(sa, ((0, b_pad - B), (0, 0)))

    grid = (b_pad // tb,)

    def tiled(shape):
        return pl.BlockSpec(shape, lambda i: (i, 0))

    def resident(x):
        # Constant index_map: the block stays VMEM-resident across grid steps.
        return pl.BlockSpec(x.shape, lambda i: (0, 0))

    per_row_macs = (in_dim * (2 * HIDDEN)
                    + 2 * (HIDDEN * HIDDEN)
                    + 2 * HIDDEN)
    flops = 2 * b_pad * per_row_macs
    param_bytes = sum(int(p.size) * p.dtype.itemsize for p in prep)
    bytes_accessed = (param_bytes
                      + b_pad * in_dim * 4
                      + b_pad * 2 * 4)

    # VMEM budget: residents (x2 buffers), double-buffered I/O tiles, and
    # ~6 KB/row of activations (h0 f32 + bf16 copies + g1/g2 f32), plus margin.
    act_bytes = tb * (2 * HIDDEN) * (4 + 2) + 2 * tb * HIDDEN * 4 + tb * in_dim * 2
    io_bytes = 2 * (tb * in_dim * 4) + 2 * (tb * 2 * 4)
    vmem_need = 2 * param_bytes + io_bytes + act_bytes
    vmem_limit = int(max(16 * 1024 * 1024, min(2 * vmem_need, 96 * 1024 * 1024)))

    q = pl.pallas_call(
        _critic_kernel,
        out_shape=jax.ShapeDtypeStruct((b_pad, 2), jnp.float32),
        grid=grid,
        in_specs=[tiled((tb, in_dim))] + [resident(p) for p in prep],
        out_specs=tiled((tb, 2)),
        compiler_params=pltpu.CompilerParams(
            dimension_semantics=("parallel",),
            vmem_limit_bytes=vmem_limit),
        cost_estimate=pl.CostEstimate(
            flops=flops, transcendentals=0, bytes_accessed=bytes_accessed),
    )(sa, *prep)

    q = q[:B]
    return q[:, 0:1], q[:, 1:2]


def init_critic_params(key, state_dim, action_dim, hidden=HIDDEN):
    """PyTorch-style uniform(-1/sqrt(fan_in), 1/sqrt(fan_in)) init, deterministic."""
    in_dim = state_dim + action_dim
    sizes = [(in_dim, hidden), (hidden, hidden), (hidden, 1),   # Q1: l1,l2,l3
             (in_dim, hidden), (hidden, hidden), (hidden, 1)]   # Q2: l4,l5,l6
    params = []
    for (fan_in, fan_out) in sizes:
        key, kw, kb = jax.random.split(key, 3)
        bound = 1.0 / jnp.sqrt(jnp.float32(fan_in))
        w = jax.random.uniform(kw, (fan_in, fan_out), jnp.float32, -bound, bound)
        b = jax.random.uniform(kb, (1, fan_out), jnp.float32, -bound, bound)
        params += [w, b]
    return tuple(params)


def _reference_forward(state, action, params):
    """Plain-JAX f32 reference (original PyTorch semantics)."""
    (w1, b1, w2, b2, w3, b3, w4, b4, w5, b5, w6, b6) = params
    sa = jnp.concatenate([state, action], axis=1)
    h = jnp.maximum(sa @ w1 + b1, 0.0)
    h = jnp.maximum(h @ w2 + b2, 0.0)
    q1 = h @ w3 + b3
    g = jnp.maximum(sa @ w4 + b4, 0.0)
    g = jnp.maximum(g @ w5 + b5, 0.0)
    q2 = g @ w6 + b6
    return q1, q2


if __name__ == "__main__":
    batch = 8
    state_dim = 12
    action_dim = 4

    key = jax.random.PRNGKey(0)
    k_state, k_action, k_params, k_s2, k_a2 = jax.random.split(key, 5)

    state = jax.random.normal(k_state, (batch, state_dim), jnp.float32)
    action = jax.random.normal(k_action, (batch, action_dim), jnp.float32)
    params = init_critic_params(k_params, state_dim, action_dim)
    prep = prepare_critic_params(params)

    # --- small demo batch (single grid step) ---
    q1, q2 = critic_forward(state, action, prep)
    jax.block_until_ready((q1, q2))
    q1_ref, q2_ref = _reference_forward(state, action, params)
    assert q1.shape == (batch, 1) and q2.shape == (batch, 1)
    # bf16 MXU operands (f32 accumulation) -> loose tolerance vs f32 reference.
    assert jnp.allclose(q1, q1_ref, atol=5e-2, rtol=5e-2)
    assert jnp.allclose(q2, q2_ref, atol=5e-2, rtol=5e-2)

    # --- non-divisible batch exercising padding + multi-step parallel grid ---
    batch2 = 300
    state2 = jax.random.normal(k_s2, (batch2, state_dim), jnp.float32)
    action2 = jax.random.normal(k_a2, (batch2, action_dim), jnp.float32)
    q1b, q2b = critic_forward(state2, action2, prep)
    jax.block_until_ready((q1b, q2b))
    q1b_ref, q2b_ref = _reference_forward(state2, action2, params)
    assert q1b.shape == (batch2, 1) and q2b.shape == (batch2, 1)
    assert jnp.allclose(q1b, q1b_ref, atol=5e-2, rtol=5e-2)
    assert jnp.allclose(q2b, q2b_ref, atol=5e-2, rtol=5e-2)

    print("KERNEL_OK")
</pallas_src>

<mosaic_0001>
module attributes {stable_mosaic.version = 11 : i64} {
  func.func @_critic_kernel(%arg0: i32, %arg1: memref<8x16xf32, #tpu.memory_space<vmem>>, %arg2: memref<16x512xbf16, #tpu.memory_space<vmem>>, %arg3: memref<1x512xf32, #tpu.memory_space<vmem>>, %arg4: memref<256x256xbf16, #tpu.memory_space<vmem>>, %arg5: memref<1x256xf32, #tpu.memory_space<vmem>>, %arg6: memref<256x256xbf16, #tpu.memory_space<vmem>>, %arg7: memref<1x256xf32, #tpu.memory_space<vmem>>, %arg8: memref<1x256xf32, #tpu.memory_space<vmem>>, %arg9: memref<1x1xf32, #tpu.memory_space<vmem>>, %arg10: memref<1x256xf32, #tpu.memory_space<vmem>>, %arg11: memref<1x1xf32, #tpu.memory_space<vmem>>, %arg12: memref<8x2xf32, #tpu.memory_space<vmem>>) attributes {dimension_semantics = [#tpu.dimension_semantics<parallel>], iteration_bounds = array<i64: 1>, scalar_prefetch = 0 : i64, scratch_operands = 0 : i64, tpu.core_type = #tpu.core_type<tc>, window_params = [{transform_indices = @transform_0, window_bounds = array<i64: 8, 16>}, {pipeline_mode = #tpu.pipeline_mode<synchronous>, transform_indices = @transform_1, window_bounds = array<i64: 16, 512>}, {pipeline_mode = #tpu.pipeline_mode<synchronous>, transform_indices = @transform_2, window_bounds = array<i64: 1, 512>}, {pipeline_mode = #tpu.pipeline_mode<synchronous>, transform_indices = @transform_3, window_bounds = array<i64: 256, 256>}, {pipeline_mode = #tpu.pipeline_mode<synchronous>, transform_indices = @transform_4, window_bounds = array<i64: 1, 256>}, {pipeline_mode = #tpu.pipeline_mode<synchronous>, transform_indices = @transform_5, window_bounds = array<i64: 256, 256>}, {pipeline_mode = #tpu.pipeline_mode<synchronous>, transform_indices = @transform_6, window_bounds = array<i64: 1, 256>}, {pipeline_mode = #tpu.pipeline_mode<synchronous>, transform_indices = @transform_7, window_bounds = array<i64: 1, 256>}, {pipeline_mode = #tpu.pipeline_mode<synchronous>, transform_indices = @transform_8, window_bounds = array<i64: 1, 1>}, {pipeline_mode = #tpu.pipeline_mode<synchronous>, transform_indices = @transform_9, window_bounds = array<i64: 1, 256>}, {pipeline_mode = #tpu.pipeline_mode<synchronous>, transform_indices = @transform_10, window_bounds = array<i64: 1, 1>}, {transform_indices = @transform_11, window_bounds = array<i64: 8, 2>}]} {
    %c0 = arith.constant 0 : index
    %c0_0 = arith.constant 0 : index
    %0 = vector.load %arg1[%c0, %c0_0] : memref<8x16xf32, #tpu.memory_space<vmem>>, vector<8x16xf32>
    %1 = arith.truncf %0 : vector<8x16xf32> to vector<8x16xbf16>
    %c0_1 = arith.constant 0 : index
    %c0_2 = arith.constant 0 : index
    %2 = vector.load %arg2[%c0_1, %c0_2] : memref<16x512xbf16, #tpu.memory_space<vmem>>, vector<16x512xbf16>
    %cst = arith.constant dense<0.000000e+00> : vector<8x512xf32>
    %3 = tpu.matmul %1, %2, %cst {dimension_numbers = #tpu.dot_dimension_numbers<[1], [0], [0], [1], [0, 0, 1, 1], [], []>} : vector<8x16xbf16>, vector<16x512xbf16>, vector<8x512xf32> -> vector<8x512xf32>
    %c0_3 = arith.constant 0 : index
    %c0_4 = arith.constant 0 : index
    %4 = vector.load %arg3[%c0_3, %c0_4] : memref<1x512xf32, #tpu.memory_space<vmem>>, vector<1x512xf32>
    %5 = vector.broadcast %4 : vector<1x512xf32> to vector<8x512xf32>
    %6 = arith.addf %3, %5 : vector<8x512xf32>
    %cst_5 = arith.constant 0.000000e+00 : f32
    %7 = vector.broadcast %cst_5 : f32 to vector<8x512xf32>
    %8 = arith.maximumf %6, %7 : vector<8x512xf32>
    %9 = vector.extract_strided_slice %8 {offsets = [0, 0], sizes = [8, 256], strides = [1, 1]} : vector<8x512xf32> to vector<8x256xf32>
    %10 = arith.truncf %9 : vector<8x256xf32> to vector<8x256xbf16>
    %11 = vector.extract_strided_slice %8 {offsets = [0, 256], sizes = [8, 256], strides = [1, 1]} : vector<8x512xf32> to vector<8x256xf32>
    %12 = arith.truncf %11 : vector<8x256xf32> to vector<8x256xbf16>
    %c0_6 = arith.constant 0 : index
    %c0_7 = arith.constant 0 : index
    %13 = vector.load %arg4[%c0_6, %c0_7] : memref<256x256xbf16, #tpu.memory_space<vmem>>, vector<256x256xbf16>
    %cst_8 = arith.constant dense<0.000000e+00> : vector<8x256xf32>
    %14 = tpu.matmul %10, %13, %cst_8 {dimension_numbers = #tpu.dot_dimension_numbers<[1], [0], [0], [1], [0, 0, 1, 1], [], []>} : vector<8x256xbf16>, vector<256x256xbf16>, vector<8x256xf32> -> vector<8x256xf32>
    %c0_9 = arith.constant 0 : index
    %c0_10 = arith.constant 0 : index
    %15 = vector.load %arg5[%c0_9, %c0_10] : memref<1x256xf32, #tpu.memory_space<vmem>>, vector<1x256xf32>
    %16 = vector.broadcast %15 : vector<1x256xf32> to vector<8x256xf32>
    %17 = arith.addf %14, %16 : vector<8x256xf32>
    %cst_11 = arith.constant 0.000000e+00 : f32
    %18 = vector.broadcast %cst_11 : f32 to vector<8x256xf32>
    %19 = arith.maximumf %17, %18 : vector<8x256xf32>
    %c0_12 = arith.constant 0 : index
    %c0_13 = arith.constant 0 : index
    %20 = vector.load %arg6[%c0_12, %c0_13] : memref<256x256xbf16, #tpu.memory_space<vmem>>, vector<256x256xbf16>
    %cst_14 = arith.constant dense<0.000000e+00> : vector<8x256xf32>
    %21 = tpu.matmul %12, %20, %cst_14 {dimension_numbers = #tpu.dot_dimension_numbers<[1], [0], [0], [1], [0, 0, 1, 1], [], []>} : vector<8x256xbf16>, vector<256x256xbf16>, vector<8x256xf32> -> vector<8x256xf32>
    %c0_15 = arith.constant 0 : index
    %c0_16 = arith.constant 0 : index
    %22 = vector.load %arg7[%c0_15, %c0_16] : memref<1x256xf32, #tpu.memory_space<vmem>>, vector<1x256xf32>
    %23 = vector.broadcast %22 : vector<1x256xf32> to vector<8x256xf32>
    %24 = arith.addf %21, %23 : vector<8x256xf32>
    %cst_17 = arith.constant 0.000000e+00 : f32
    %25 = vector.broadcast %cst_17 : f32 to vector<8x256xf32>
    %26 = arith.maximumf %24, %25 : vector<8x256xf32>
    %c0_18 = arith.constant 0 : index
    %c0_19 = arith.constant 0 : index
    %27 = vector.load %arg8[%c0_18, %c0_19] : memref<1x256xf32, #tpu.memory_space<vmem>>, vector<1x256xf32>
    %28 = vector.broadcast %27 : vector<1x256xf32> to vector<8x256xf32>
    %29 = arith.mulf %19, %28 : vector<8x256xf32>
    %cst_20 = arith.constant dense<0.000000e+00> : vector<8xf32>
    %30 = vector.multi_reduction <add>, %29, %cst_20 [1] : vector<8x256xf32> to vector<8xf32>
    %31 = vector.shape_cast %30 : vector<8xf32> to vector<8x1xf32>
    %c0_21 = arith.constant 0 : index
    %c0_22 = arith.constant 0 : index
    %32 = vector.load %arg9[%c0_21, %c0_22] : memref<1x1xf32, #tpu.memory_space<vmem>>, vector<1x1xf32>
    %33 = vector.broadcast %32 : vector<1x1xf32> to vector<8x1xf32>
    %34 = arith.addf %31, %33 : vector<8x1xf32>
    %c0_23 = arith.constant 0 : index
    %c0_24 = arith.constant 0 : index
    %35 = vector.load %arg10[%c0_23, %c0_24] : memref<1x256xf32, #tpu.memory_space<vmem>>, vector<1x256xf32>
    %36 = vector.broadcast %35 : vector<1x256xf32> to vector<8x256xf32>
    %37 = arith.mulf %26, %36 : vector<8x256xf32>
    %cst_25 = arith.constant dense<0.000000e+00> : vector<8xf32>
    %38 = vector.multi_reduction <add>, %37, %cst_25 [1] : vector<8x256xf32> to vector<8xf32>
    %39 = vector.shape_cast %38 : vector<8xf32> to vector<8x1xf32>
    %c0_26 = arith.constant 0 : index
    %c0_27 = arith.constant 0 : index
    %40 = vector.load %arg11[%c0_26, %c0_27] : memref<1x1xf32, #tpu.memory_space<vmem>>, vector<1x1xf32>
    %41 = vector.broadcast %40 : vector<1x1xf32> to vector<8x1xf32>
    %42 = arith.addf %39, %41 : vector<8x1xf32>
    %43 = tpu.concatenate %34, %42 in 1 : vector<8x1xf32>, vector<8x1xf32> -> vector<8x2xf32>
    %c0_28 = arith.constant 0 : index
    %c0_29 = arith.constant 0 : index
    %44 = vector.load %arg12[%c0_28, %c0_29] : memref<8x2xf32, #tpu.memory_space<vmem>>, vector<8x2xf32>
    tpu.vector_store %arg12[%c0_28, %c0_29], %43 {strides = array<i32>} : memref<8x2xf32, #tpu.memory_space<vmem>>, vector<8x2xf32>,
    return
  }
  func.func @transform_0(%arg0: i32) -> (i32, i32) {
    %c0_i32 = arith.constant 0 : i32
    %c0_i32_0 = arith.constant 0 : i32
    return %arg0, %c0_i32 : i32, i32
  }
  func.func @transform_1(%arg0: i32) -> (i32, i32) {
    %c0_i32 = arith.constant 0 : i32
    %c0_i32_0 = arith.constant 0 : i32
    %c0_i32_1 = arith.constant 0 : i32
    return %c0_i32, %c0_i32_0 : i32, i32
  }
  func.func @transform_2(%arg0: i32) -> (i32, i32) {
    %c0_i32 = arith.constant 0 : i32
    %c0_i32_0 = arith.constant 0 : i32
    %c0_i32_1 = arith.constant 0 : i32
    return %c0_i32, %c0_i32_0 : i32, i32
  }
  func.func @transform_3(%arg0: i32) -> (i32, i32) {
    %c0_i32 = arith.constant 0 : i32
    %c0_i32_0 = arith.constant 0 : i32
    %c0_i32_1 = arith.constant 0 : i32
    return %c0_i32, %c0_i32_0 : i32, i32
  }
  func.func @transform_4(%arg0: i32) -> (i32, i32) {
    %c0_i32 = arith.constant 0 : i32
    %c0_i32_0 = arith.constant 0 : i32
    %c0_i32_1 = arith.constant 0 : i32
    return %c0_i32, %c0_i32_0 : i32, i32
  }
  func.func @transform_5(%arg0: i32) -> (i32, i32) {
    %c0_i32 = arith.constant 0 : i32
    %c0_i32_0 = arith.constant 0 : i32
    %c0_i32_1 = arith.constant 0 : i32
    return %c0_i32, %c0_i32_0 : i32, i32
  }
  func.func @transform_6(%arg0: i32) -> (i32, i32) {
    %c0_i32 = arith.constant 0 : i32
    %c0_i32_0 = arith.constant 0 : i32
    %c0_i32_1 = arith.constant 0 : i32
    return %c0_i32, %c0_i32_0 : i32, i32
  }
  func.func @transform_7(%arg0: i32) -> (i32, i32) {
    %c0_i32 = arith.constant 0 : i32
    %c0_i32_0 = arith.constant 0 : i32
    %c0_i32_1 = arith.constant 0 : i32
    return %c0_i32, %c0_i32_0 : i32, i32
  }
  func.func @transform_8(%arg0: i32) -> (i32, i32) {
    %c0_i32 = arith.constant 0 : i32
    %c0_i32_0 = arith.constant 0 : i32
    %c0_i32_1 = arith.constant 0 : i32
    return %c0_i32, %c0_i32_0 : i32, i32
  }
  func.func @transform_9(%arg0: i32) -> (i32, i32) {
    %c0_i32 = arith.constant 0 : i32
    %c0_i32_0 = arith.constant 0 : i32
    %c0_i32_1 = arith.constant 0 : i32
    return %c0_i32, %c0_i32_0 : i32, i32
  }
  func.func @transform_10(%arg0: i32) -> (i32, i32) {
    %c0_i32 = arith.constant 0 : i32
    %c0_i32_0 = arith.constant 0 : i32
    %c0_i32_1 = arith.constant 0 : i32
    return %c0_i32, %c0_i32_0 : i32, i32
  }
  func.func @transform_11(%arg0: i32) -> (i32, i32) {
    %c0_i32 = arith.constant 0 : i32
    %c0_i32_0 = arith.constant 0 : i32
    return %arg0, %c0_i32 : i32, i32
  }
}

</mosaic_0001>

<llo_original>
// kernel: critic_forward.1
$region0: #{critic_forward.1}
  #allocation0 [shape = 'u32[]', space=smem, size = 0x4, offset = 0x4, fixed_abs, tag = 'smem constant byte address 0x4 - core index']
  #allocation1 [shape = 'u32[144,128]{1,0:T(1,128)}', space=vmem, size = 0x12000, scoped, tag = 'internal scratch']
  #allocation2 [shape = 'f32[1,1]{1,0:T(1,128)S(1)}', space=vmem, size = 0x200, scoped, tag = 'scoped memory for critic_forward.1']
  #allocation3 [shape = 'f32[1,1]{1,0:T(1,128)S(1)}', space=vmem, size = 0x200, scoped, tag = 'scoped memory for critic_forward.1']
  %s0 = inlined_call_operand.vmem [shape: f32[8,16], index: 0, kind: input, shape index: {}]
  %s1 = inlined_call_operand.vmem [shape: bf16[16,512], index: 1, kind: input, shape index: {}]
  %s2 = inlined_call_operand.vmem [shape: f32[1,512], index: 2, kind: input, shape index: {}]
  %s3 = inlined_call_operand.hbm [shape: bf16[256,256], index: 3, kind: input, shape index: {}]
  %s4 = inlined_call_operand.vmem [shape: f32[1,256], index: 4, kind: input, shape index: {}]
  %s5 = inlined_call_operand.hbm [shape: bf16[256,256], index: 5, kind: input, shape index: {}]
  %s6 = inlined_call_operand.vmem [shape: f32[1,256], index: 6, kind: input, shape index: {}]
  %s7 = inlined_call_operand.vmem [shape: f32[1,256], index: 7, kind: input, shape index: {}]
  %s8 = inlined_call_operand.<no memory space> [shape: f32[1,1], index: 8, kind: input, shape index: {}]
  %s9 = inlined_call_operand.vmem [shape: f32[1,256], index: 9, kind: input, shape index: {}]
  %s10 = inlined_call_operand.<no memory space> [shape: f32[1,1], index: 10, kind: input, shape index: {}]
  %s11 = inlined_call_operand.vmem [shape: f32[8,2], index: 11, kind: output, shape index: {}]
  %s12 = sld [smem:[#allocation0]]
  $region62: #{critic_forward.1} parent=0
    _
  %s14 = ssub.s32 1, %s12
  %s15 = scalar_select 0, %s14, %s12
  %v16 = vstv %s8
  %17 = vst [vmem:[#allocation2] sm:$0x1] %v16
  %v18 = vstv %s10
  %19 = vst [vmem:[#allocation3] sm:$0x1] %v18
  $region1: #{critic_forward.1} parent=0
    #allocation4 [shape = 'u8[131072]{0}', space=vmem, size = 0x20000, scoped, tag = 'input window, operand 3, single buffered']
    #allocation5 [shape = 's32[1]{0}', space=sflag, size = 0x4, scoped, tag = 'scoped memory for critic_forward.1']
    #allocation6 [shape = 'u8[131072]{0}', space=vmem, size = 0x20000, scoped, tag = 'input window, operand 5, single buffered']
    #allocation7 [shape = 's32[1]{0}', space=sflag, size = 0x4, scoped, tag = 'scoped memory for critic_forward.1']
    %20 = vsyncpa [#allocation5], 0
    %21 = vsyncpa [#allocation7], 0
    // Predicated region
    $region2: #{critic_forward.1} parent=1 // pred_check
      _
    $region3: #{critic_forward.1} parent=1 // pred_check_branch
      %23 = sbr.rel (0) target = $region5
    $region4: #{critic_forward.1} parent=1 // pred_region
      _
    $region5: #{critic_forward.1} parent=1 // pred_fallthru
      _
    // Predicated region
    $region6: #{critic_forward.1} parent=1 // pred_check
      _
    $region7: #{critic_forward.1} parent=1 // pred_check_branch
      %25 = sbr.rel (0) target = $region9
    $region8: #{critic_forward.1} parent=1 // pred_region
      _
    $region9: #{critic_forward.1} parent=1 // pred_fallthru
      _
    // Predicated region
    $region10: #{critic_forward.1} parent=1 // pred_check
      _
    $region11: #{critic_forward.1} parent=1 // pred_check_branch
      %27 = sbr.rel (0) target = $region13
    $region12: #{critic_forward.1} parent=1 // pred_region
      _
    $region13: #{critic_forward.1} parent=1 // pred_fallthru
      _
    // Predicated region
    $region14: #{critic_forward.1} parent=1 // pred_check
      _
    $region15: #{critic_forward.1} parent=1 // pred_check_branch
      %29 = sbr.rel (0) target = $region17
    $region16: #{critic_forward.1} parent=1 // pred_region
      %s31 = ssub.s32 4096, 4096
      %32 = vsyncadd [#allocation5], %s31
      %s33 = sshll.u32 [#allocation4], 4
      %s34 = int_to_ptr.vmem [resolvable:$true] %s33
      %39 = dma.hbm_to_vmem [thread:$0]  %s3, 4096, %s34, [#allocation5], 128, 128, 8
    $region17: #{critic_forward.1} parent=1 // pred_fallthru
      _
    // Predicated region
    $region18: #{critic_forward.1} parent=1 // pred_check
      _
    $region19: #{critic_forward.1} parent=1 // pred_check_branch
      %41 = sbr.rel (0) target = $region21
    $region20: #{critic_forward.1} parent=1 // pred_region
      _
    $region21: #{critic_forward.1} parent=1 // pred_fallthru
      _
    // Predicated region
    $region22: #{critic_forward.1} parent=1 // pred_check
      _
    $region23: #{critic_forward.1} parent=1 // pred_check_branch
      %43 = sbr.rel (0) target = $region25
    $region24: #{critic_forward.1} parent=1 // pred_region
      %s45 = ssub.s32 4096, 4096
      %46 = vsyncadd [#allocation7], %s45
      %s47 = sshll.u32 [#allocation6], 4
      %s48 = int_to_ptr.vmem [resolvable:$true] %s47
      %53 = dma.hbm_to_vmem [thread:$0]  %s5, 4096, %s48, [#allocation7], 128, 128, 8
    $region25: #{critic_forward.1} parent=1 // pred_fallthru
      _
    // Predicated region
    $region26: #{critic_forward.1} parent=1 // pred_check
      _
    $region27: #{critic_forward.1} parent=1 // pred_check_branch
      %55 = sbr.rel (0) target = $region29
    $region28: #{critic_forward.1} parent=1 // pred_region
      _
    $region29: #{critic_forward.1} parent=1 // pred_fallthru
      _
    // Predicated region
    $region30: #{critic_forward.1} parent=1 // pred_check
      _
    $region31: #{critic_forward.1} parent=1 // pred_check_branch
      %57 = sbr.rel (0) target = $region33
    $region32: #{critic_forward.1} parent=1 // pred_region
      _
    $region33: #{critic_forward.1} parent=1 // pred_fallthru
      _
    // Predicated region
    $region34: #{critic_forward.1} parent=1 // pred_check
      _
    $region35: #{critic_forward.1} parent=1 // pred_check_branch
      %59 = sbr.rel (0) target = $region37
    $region36: #{critic_forward.1} parent=1 // pred_region
      _
    $region37: #{critic_forward.1} parent=1 // pred_fallthru
      _
    // Predicated region
    $region38: #{critic_forward.1} parent=1 // pred_check
      _
    $region39: #{critic_forward.1} parent=1 // pred_check_branch
      %61 = sbr.rel (0) target = $region41
    $region40: #{critic_forward.1} parent=1 // pred_region
      _
    $region41: #{critic_forward.1} parent=1 // pred_fallthru
      _
    // Predicated region
    $region42: #{critic_forward.1} parent=1 // pred_check
      _
    $region43: #{critic_forward.1} parent=1 // pred_check_branch
      %63 = sbr.rel (0) target = $region45
    $region44: #{critic_forward.1} parent=1 // pred_region
      _
    $region45: #{critic_forward.1} parent=1 // pred_fallthru
      _
    // Predicated region
    $region46: #{critic_forward.1} parent=1 // pred_check
      _
    $region47: #{critic_forward.1} parent=1 // pred_check_branch
      %65 = sbr.rel (0) target = $region49
    $region48: #{critic_forward.1} parent=1 // pred_region
      %66 = dma.done [#allocation5], 4096
    $region49: #{critic_forward.1} parent=1 // pred_fallthru
      _
    // Predicated region
    $region50: #{critic_forward.1} parent=1 // pred_check
      _
    $region51: #{critic_forward.1} parent=1 // pred_check_branch
      %68 = sbr.rel (0) target = $region53
    $region52: #{critic_forward.1} parent=1 // pred_region
      %69 = dma.done [#allocation7], 4096
    $region53: #{critic_forward.1} parent=1 // pred_fallthru
      _
    %v71 = vld [vmem:[%s0] sm:$0xff]
    %v72 = vpack.c.bf16 %v71, %v71
    %v73 = vld [vmem:[%s1] sm:$0xff]
    %v74 = vld [vmem:[%s1 + $0x8] sm:$0xff]
    %v75 = vld [vmem:[%s1 + $0x10] sm:$0xff]
    %v76 = vld [vmem:[%s1 + $0x18] sm:$0xff]
    %v77 = vld [vmem:[%s2] sm:$0xf]
    %v79 = vlaneseq
    %v80 = vshrl.u32 %v79, 7
    %v81 = vsub.s32 0, %v80
    %v82 = vrot.slane %v77, %v81
    %v83 = vlaneseq
    %v84 = vshrl.u32 %v83, 7
    %v85 = vsub.s32 1, %v84
    %v86 = vrot.slane %v77, %v85
    %v87 = vlaneseq
    %v88 = vshrl.u32 %v87, 7
    %v89 = vsub.s32 2, %v88
    %v90 = vrot.slane %v77, %v89
    %v91 = vlaneseq
    %v92 = vshrl.u32 %v91, 7
    %v93 = vsub.s32 3, %v92
    %v94 = vrot.slane %v77, %v93
    %v103 = vunpack.c.l.b16 %v73
    %v104 = vunpack.c.h.b16 %v73
    %v105 = vunpack.c.l.b16 %v74
    %v106 = vunpack.c.h.b16 %v74
    %v107 = vunpack.c.l.b16 %v75
    %v108 = vunpack.c.h.b16 %v75
    %v109 = vunpack.c.l.b16 %v76
    %v110 = vunpack.c.h.b16 %v76
    %v111 = vpack.c.b16 %v107, %v103
    %v112 = vpack.c.b16 %v108, %v104
    %v113 = vpack.c.b16 %v109, %v105
    %v114 = vpack.c.b16 %v110, %v106
    %vm119 = vcmask 130048
    %v121 = vsel %vm119, %v72, 0
    %123 = vmatprep.subr.bf16.mxu0 %v112
    %124 = vmatpush1.bf16.msra.mxu0 %v111
    %125 = vmatprep.subr.bf16.mxu0 0
    %126 = vmatpush1.bf16.msra.mxu0 0
    %127 = vmatprep.subr.bf16.mxu0 0
    %128 = vmatpush1.bf16.msra.mxu0 0
    %129 = vmatprep.subr.bf16.mxu0 0
    %130 = vmatpush1.bf16.msra.mxu0 0
    %131 = vmatprep.subr.bf16.mxu0 0
    %132 = vmatpush1.bf16.msra.mxu0 0
    %133 = vmatprep.subr.bf16.mxu0 0
    %134 = vmatpush1.bf16.msra.mxu0 0
    %135 = vmatprep.subr.bf16.mxu0 0
    %136 = vmatpush1.bf16.msra.mxu0 0
    %137 = vmatprep.subr.bf16.mxu0 0
    %138 = vmatpush1.bf16.msra.mxu0 0
    %139 = vmatprep.subr.bf16.mxu0 0
    %140 = vmatpush1.bf16.msra.mxu0 0
    %141 = vmatprep.subr.bf16.mxu0 0
    %142 = vmatpush1.bf16.msra.mxu0 0
    %143 = vmatprep.subr.bf16.mxu0 0
    %144 = vmatpush1.bf16.msra.mxu0 0
    %145 = vmatprep.subr.bf16.mxu0 0
    %146 = vmatpush1.bf16.msra.mxu0 0
    %147 = vmatprep.subr.bf16.mxu0 0
    %148 = vmatpush1.bf16.msra.mxu0 0
    %149 = vmatprep.subr.bf16.mxu0 0
    %150 = vmatpush1.bf16.msra.mxu0 0
    %151 = vmatprep.subr.bf16.mxu0 0
    %152 = vmatpush1.bf16.msra.mxu0 0
    %153 = vmatprep.subr.bf16.mxu0 0
    %154 = vmatpush1.bf16.msra.mxu0 0
    %155 = vmatprep.mubr.bf16.mxu0 0
    %156 = vmatmul.mubr.bf16.gmra.mrb[0].mxu0 %v121
    %v157 = vpop.f32.mrb[0].mxu0
    %v158 = vadd.f32 %v82, %v157
    %v159 = vpop.f32.mrb[0].mxu0
    %v160 = vadd.f32 %v86, %v159
    %v161 = vpop.f32.mrb[0].mxu0
    %v162 = vpop.f32.mrb[0].mxu0
    %163 = vdwg.mxu0
    %164 = vmatprep.subr.bf16.mxu0 %v114
    %165 = vmatpush1.bf16.msra.mxu0 %v113
    %166 = vmatprep.subr.bf16.mxu0 0
    %167 = vmatpush1.bf16.msra.mxu0 0
    %168 = vmatprep.subr.bf16.mxu0 0
    %169 = vmatpush1.bf16.msra.mxu0 0
    %170 = vmatprep.subr.bf16.mxu0 0
    %171 = vmatpush1.bf16.msra.mxu0 0
    %172 = vmatprep.subr.bf16.mxu0 0
    %173 = vmatpush1.bf16.msra.mxu0 0
    %174 = vmatprep.subr.bf16.mxu0 0
    %175 = vmatpush1.bf16.msra.mxu0 0
    %176 = vmatprep.subr.bf16.mxu0 0
    %177 = vmatpush1.bf16.msra.mxu0 0
    %178 = vmatprep.subr.bf16.mxu0 0
    %179 = vmatpush1.bf16.msra.mxu0 0
    %180 = vmatprep.subr.bf16.mxu0 0
    %181 = vmatpush1.bf16.msra.mxu0 0
    %182 = vmatprep.subr.bf16.mxu0 0
    %183 = vmatpush1.bf16.msra.mxu0 0
    %184 = vmatprep.subr.bf16.mxu0 0
    %185 = vmatpush1.bf16.msra.mxu0 0
    %186 = vmatprep.subr.bf16.mxu0 0
    %187 = vmatpush1.bf16.msra.mxu0 0
    %188 = vmatprep.subr.bf16.mxu0 0
    %189 = vmatpush1.bf16.msra.mxu0 0
    %190 = vmatprep.subr.bf16.mxu0 0
    %191 = vmatpush1.bf16.msra.mxu0 0
    %192 = vmatprep.subr.bf16.mxu0 0
    %193 = vmatpush1.bf16.msra.mxu0 0
    %194 = vmatprep.subr.bf16.mxu0 0
    %195 = vmatpush1.bf16.msra.mxu0 0
    %196 = vmatprep.mubr.bf16.mxu0 0
    %197 = vmatmul.mubr.bf16.gmra.mrb[0].mxu0 %v121
    %v198 = vpop.f32.mrb[0].mxu0
    %v199 = vadd.f32 %v90, %v198
    %v200 = vpop.f32.mrb[0].mxu0
    %v201 = vadd.f32 %v94, %v200
    %v202 = vpop.f32.mrb[0].mxu0
    %v203 = vpop.f32.mrb[0].mxu0
    %204 = vdwg.mxu0
    %v205 = vmax.f32 %v158, 0.0
    %v206 = vmax.f32 %v160, 0.0
    %v207 = vmax.f32 %v199, 0.0
    %v208 = vmax.f32 %v201, 0.0
    %v209 = vpack.c.bf16 %v205, %v205
    %v210 = vpack.c.bf16 %v206, %v206
    %v211 = vpack.c.bf16 %v207, %v207
    %v212 = vpack.c.bf16 %v208, %v208
    %v213 = vld [vmem:[#allocation4] sm:$0xff]
    %v214 = vld [vmem:[#allocation4 + $0x8] sm:$0xff]
    %v215 = vld [vmem:[#allocation4 + $0x10] sm:$0xff]
    %v216 = vld [vmem:[#allocation4 + $0x18] sm:$0xff]
    %v217 = vld [vmem:[#allocation4 + $0x20] sm:$0xff]
    %v218 = vld [vmem:[#allocation4 + $0x28] sm:$0xff]
    %v219 = vld [vmem:[#allocation4 + $0x30] sm:$0xff]
    %v220 = vld [vmem:[#allocation4 + $0x38] sm:$0xff]
    %v221 = vld [vmem:[#allocation4 + $0x40] sm:$0xff]
    %v222 = vld [vmem:[#allocation4 + $0x48] sm:$0xff]
    %v223 = vld [vmem:[#allocation4 + $0x50] sm:$0xff]
    %v224 = vld [vmem:[#allocation4 + $0x58] sm:$0xff]
    %v225 = vld [vmem:[#allocation4 + $0x60] sm:$0xff]
    %v226 = vld [vmem:[#allocation4 + $0x68] sm:$0xff]
    %v227 = vld [vmem:[#allocation4 + $0x70] sm:$0xff]
    %v228 = vld [vmem:[#allocation4 + $0x78] sm:$0xff]
    %v229 = vld [vmem:[#allocation4 + $0x80] sm:$0xff]
    %v230 = vld [vmem:[#allocation4 + $0x88] sm:$0xff]
    %v231 = vld [vmem:[#allocation4 + $0x90] sm:$0xff]
    %v232 = vld [vmem:[#allocation4 + $0x98] sm:$0xff]
    %v233 = vld [vmem:[#allocation4 + $0xa0] sm:$0xff]
    %v234 = vld [vmem:[#allocation4 + $0xa8] sm:$0xff]
    %v235 = vld [vmem:[#allocation4 + $0xb0] sm:$0xff]
    %v236 = vld [vmem:[#allocation4 + $0xb8] sm:$0xff]
    %v237 = vld [vmem:[#allocation4 + $0xc0] sm:$0xff]
    %v238 = vld [vmem:[#allocation4 + $0xc8] sm:$0xff]
    %v239 = vld [vmem:[#allocation4 + $0xd0] sm:$0xff]
    %v240 = vld [vmem:[#allocation4 + $0xd8] sm:$0xff]
    %v241 = vld [vmem:[#allocation4 + $0xe0] sm:$0xff]
    %v242 = vld [vmem:[#allocation4 + $0xe8] sm:$0xff]
    %v243 = vld [vmem:[#allocation4 + $0xf0] sm:$0xff]
    %v244 = vld [vmem:[#allocation4 + $0xf8] sm:$0xff]
    %v245 = vld [vmem:[%s4] sm:$0x3]
    %v247 = vlaneseq
    %v248 = vshrl.u32 %v247, 7
    %v249 = vsub.s32 0, %v248
    %v250 = vrot.slane %v245, %v249
    %v251 = vlaneseq
    %v252 = vshrl.u32 %v251, 7
    %v253 = vsub.s32 1, %v252
    %v254 = vrot.slane %v245, %v253
    %v289 = vunpack.c.l.b16 %v213
    %v290 = vunpack.c.h.b16 %v213
    %v291 = vunpack.c.l.b16 %v214
    %v292 = vunpack.c.h.b16 %v214
    %v293 = vunpack.c.l.b16 %v215
    %v294 = vunpack.c.h.b16 %v215
    %v295 = vunpack.c.l.b16 %v216
    %v296 = vunpack.c.h.b16 %v216
    %v297 = vunpack.c.l.b16 %v217
    %v298 = vunpack.c.h.b16 %v217
    %v299 = vunpack.c.l.b16 %v218
    %v300 = vunpack.c.h.b16 %v218
    %v301 = vunpack.c.l.b16 %v219
    %v302 = vunpack.c.h.b16 %v219
    %v303 = vunpack.c.l.b16 %v220
    %v304 = vunpack.c.h.b16 %v220
    %v305 = vunpack.c.l.b16 %v221
    %v306 = vunpack.c.h.b16 %v221
    %v307 = vunpack.c.l.b16 %v222
    %v308 = vunpack.c.h.b16 %v222
    %v309 = vunpack.c.l.b16 %v223
    %v310 = vunpack.c.h.b16 %v223
    %v311 = vunpack.c.l.b16 %v224
    %v312 = vunpack.c.h.b16 %v224
    %v313 = vunpack.c.l.b16 %v225
    %v314 = vunpack.c.h.b16 %v225
    %v315 = vunpack.c.l.b16 %v226
    %v316 = vunpack.c.h.b16 %v226
    %v317 = vunpack.c.l.b16 %v227
    %v318 = vunpack.c.h.b16 %v227
    %v319 = vunpack.c.l.b16 %v228
    %v320 = vunpack.c.h.b16 %v228
    %v321 = vunpack.c.l.b16 %v229
    %v322 = vunpack.c.h.b16 %v229
    %v323 = vunpack.c.l.b16 %v230
    %v324 = vunpack.c.h.b16 %v230
    %v325 = vunpack.c.l.b16 %v231
    %v326 = vunpack.c.h.b16 %v231
    %v327 = vunpack.c.l.b16 %v232
    %v328 = vunpack.c.h.b16 %v232
    %v329 = vunpack.c.l.b16 %v233
    %v330 = vunpack.c.h.b16 %v233
    %v331 = vunpack.c.l.b16 %v234
    %v332 = vunpack.c.h.b16 %v234
    %v333 = vunpack.c.l.b16 %v235
    %v334 = vunpack.c.h.b16 %v235
    %v335 = vunpack.c.l.b16 %v236
    %v336 = vunpack.c.h.b16 %v236
    %v337 = vunpack.c.l.b16 %v237
    %v338 = vunpack.c.h.b16 %v237
    %v339 = vunpack.c.l.b16 %v238
    %v340 = vunpack.c.h.b16 %v238
    %v341 = vunpack.c.l.b16 %v239
    %v342 = vunpack.c.h.b16 %v239
    %v343 = vunpack.c.l.b16 %v240
    %v344 = vunpack.c.h.b16 %v240
    %v345 = vunpack.c.l.b16 %v241
    %v346 = vunpack.c.h.b16 %v241
    %v347 = vunpack.c.l.b16 %v242
    %v348 = vunpack.c.h.b16 %v242
    %v349 = vunpack.c.l.b16 %v243
    %v350 = vunpack.c.h.b16 %v243
    %v351 = vunpack.c.l.b16 %v244
    %v352 = vunpack.c.h.b16 %v244
    %v353 = vpack.c.b16 %v291, %v289
    %v354 = vpack.c.b16 %v292, %v290
    %v355 = vpack.c.b16 %v295, %v293
    %v356 = vpack.c.b16 %v296, %v294
    %v357 = vpack.c.b16 %v299, %v297
    %v358 = vpack.c.b16 %v300, %v298
    %v359 = vpack.c.b16 %v303, %v301
    %v360 = vpack.c.b16 %v304, %v302
    %v361 = vpack.c.b16 %v307, %v305
    %v362 = vpack.c.b16 %v308, %v306
    %v363 = vpack.c.b16 %v311, %v309
    %v364 = vpack.c.b16 %v312, %v310
    %v365 = vpack.c.b16 %v315, %v313
    %v366 = vpack.c.b16 %v316, %v314
    %v367 = vpack.c.b16 %v319, %v317
    %v368 = vpack.c.b16 %v320, %v318
    %v369 = vpack.c.b16 %v323, %v321
    %v370 = vpack.c.b16 %v324, %v322
    %v371 = vpack.c.b16 %v327, %v325
    %v372 = vpack.c.b16 %v328, %v326
    %v373 = vpack.c.b16 %v331, %v329
    %v374 = vpack.c.b16 %v332, %v330
    %v375 = vpack.c.b16 %v335, %v333
    %v376 = vpack.c.b16 %v336, %v334
    %v377 = vpack.c.b16 %v339, %v337
    %v378 = vpack.c.b16 %v340, %v338
    %v379 = vpack.c.b16 %v343, %v341
    %v380 = vpack.c.b16 %v344, %v342
    %v381 = vpack.c.b16 %v347, %v345
    %v382 = vpack.c.b16 %v348, %v346
    %v383 = vpack.c.b16 %v351, %v349
    %v384 = vpack.c.b16 %v352, %v350
    %417 = vmatprep.subr.bf16.mxu0 %v354
    %418 = vmatpush1.bf16.msra.mxu0 %v353
    %419 = vmatprep.subr.bf16.mxu0 %v356
    %420 = vmatpush1.bf16.msra.mxu0 %v355
    %421 = vmatprep.subr.bf16.mxu0 %v358
    %422 = vmatpush1.bf16.msra.mxu0 %v357
    %423 = vmatprep.subr.bf16.mxu0 %v360
    %424 = vmatpush1.bf16.msra.mxu0 %v359
    %425 = vmatprep.subr.bf16.mxu0 %v362
    %426 = vmatpush1.bf16.msra.mxu0 %v361
    %427 = vmatprep.subr.bf16.mxu0 %v364
    %428 = vmatpush1.bf16.msra.mxu0 %v363
    %429 = vmatprep.subr.bf16.mxu0 %v366
    %430 = vmatpush1.bf16.msra.mxu0 %v365
    %431 = vmatprep.subr.bf16.mxu0 %v368
    %432 = vmatpush1.bf16.msra.mxu0 %v367
    %433 = vmatprep.subr.bf16.mxu0 %v370
    %434 = vmatpush1.bf16.msra.mxu0 %v369
    %435 = vmatprep.subr.bf16.mxu0 %v372
    %436 = vmatpush1.bf16.msra.mxu0 %v371
    %437 = vmatprep.subr.bf16.mxu0 %v374
    %438 = vmatpush1.bf16.msra.mxu0 %v373
    %439 = vmatprep.subr.bf16.mxu0 %v376
    %440 = vmatpush1.bf16.msra.mxu0 %v375
    %441 = vmatprep.subr.bf16.mxu0 %v378
    %442 = vmatpush1.bf16.msra.mxu0 %v377
    %443 = vmatprep.subr.bf16.mxu0 %v380
    %444 = vmatpush1.bf16.msra.mxu0 %v379
    %445 = vmatprep.subr.bf16.mxu0 %v382
    %446 = vmatpush1.bf16.msra.mxu0 %v381
    %447 = vmatprep.subr.bf16.mxu0 %v384
    %448 = vmatpush1.bf16.msra.mxu0 %v383
    %449 = vmatprep.mubr.bf16.mxu0 %v210
    %450 = vmatmul.mubr.bf16.gmra.mrb[0].mxu0 %v209
    %v451 = vpop.f32.mrb[0].mxu0
    %v452 = vadd.f32 %v250, %v451
    %v453 = vpop.f32.mrb[0].mxu0
    %v454 = vadd.f32 %v254, %v453
    %v455 = vpop.f32.mrb[0].mxu0
    %v456 = vpop.f32.mrb[0].mxu0
    %457 = vdwg.mxu0
    %v458 = vmax.f32 %v452, 0.0
    %v459 = vmax.f32 %v454, 0.0
    %v460 = vld [vmem:[#allocation6] sm:$0xff]
    %v461 = vld [vmem:[#allocation6 + $0x8] sm:$0xff]
    %v462 = vld [vmem:[#allocation6 + $0x10] sm:$0xff]
    %v463 = vld [vmem:[#allocation6 + $0x18] sm:$0xff]
    %v464 = vld [vmem:[#allocation6 + $0x20] sm:$0xff]
    %v465 = vld [vmem:[#allocation6 + $0x28] sm:$0xff]
    %v466 = vld [vmem:[#allocation6 + $0x30] sm:$0xff]
    %v467 = vld [vmem:[#allocation6 + $0x38] sm:$0xff]
    %v468 = vld [vmem:[#allocation6 + $0x40] sm:$0xff]
    %v469 = vld [vmem:[#allocation6 + $0x48] sm:$0xff]
    %v470 = vld [vmem:[#allocation6 + $0x50] sm:$0xff]
    %v471 = vld [vmem:[#allocation6 + $0x58] sm:$0xff]
    %v472 = vld [vmem:[#allocation6 + $0x60] sm:$0xff]
    %v473 = vld [vmem:[#allocation6 + $0x68] sm:$0xff]
    %v474 = vld [vmem:[#allocation6 + $0x70] sm:$0xff]
    %v475 = vld [vmem:[#allocation6 + $0x78] sm:$0xff]
    %v476 = vld [vmem:[#allocation6 + $0x80] sm:$0xff]
    %v477 = vld [vmem:[#allocation6 + $0x88] sm:$0xff]
    %v478 = vld [vmem:[#allocation6 + $0x90] sm:$0xff]
    %v479 = vld [vmem:[#allocation6 + $0x98] sm:$0xff]
    %v480 = vld [vmem:[#allocation6 + $0xa0] sm:$0xff]
    %v481 = vld [vmem:[#allocation6 + $0xa8] sm:$0xff]
    %v482 = vld [vmem:[#allocation6 + $0xb0] sm:$0xff]
    %v483 = vld [vmem:[#allocation6 + $0xb8] sm:$0xff]
    %v484 = vld [vmem:[#allocation6 + $0xc0] sm:$0xff]
    %v485 = vld [vmem:[#allocation6 + $0xc8] sm:$0xff]
    %v486 = vld [vmem:[#allocation6 + $0xd0] sm:$0xff]
    %v487 = vld [vmem:[#allocation6 + $0xd8] sm:$0xff]
    %v488 = vld [vmem:[#allocation6 + $0xe0] sm:$0xff]
    %v489 = vld [vmem:[#allocation6 + $0xe8] sm:$0xff]
    %v490 = vld [vmem:[#allocation6 + $0xf0] sm:$0xff]
    %v491 = vld [vmem:[#allocation6 + $0xf8] sm:$0xff]
    %v492 = vld [vmem:[%s6] sm:$0x3]
    %v494 = vlaneseq
    %v495 = vshrl.u32 %v494, 7
    %v496 = vsub.s32 0, %v495
    %v497 = vrot.slane %v492, %v496
    %v498 = vlaneseq
    %v499 = vshrl.u32 %v498, 7
    %v500 = vsub.s32 1, %v499
    %v501 = vrot.slane %v492, %v500
    %v536 = vunpack.c.l.b16 %v460
    %v537 = vunpack.c.h.b16 %v460
    %v538 = vunpack.c.l.b16 %v461
    %v539 = vunpack.c.h.b16 %v461
    %v540 = vunpack.c.l.b16 %v462
    %v541 = vunpack.c.h.b16 %v462
    %v542 = vunpack.c.l.b16 %v463
    %v543 = vunpack.c.h.b16 %v463
    %v544 = vunpack.c.l.b16 %v464
    %v545 = vunpack.c.h.b16 %v464
    %v546 = vunpack.c.l.b16 %v465
    %v547 = vunpack.c.h.b16 %v465
    %v548 = vunpack.c.l.b16 %v466
    %v549 = vunpack.c.h.b16 %v466
    %v550 = vunpack.c.l.b16 %v467
    %v551 = vunpack.c.h.b16 %v467
    %v552 = vunpack.c.l.b16 %v468
    %v553 = vunpack.c.h.b16 %v468
    %v554 = vunpack.c.l.b16 %v469
    %v555 = vunpack.c.h.b16 %v469
    %v556 = vunpack.c.l.b16 %v470
    %v557 = vunpack.c.h.b16 %v470
    %v558 = vunpack.c.l.b16 %v471
    %v559 = vunpack.c.h.b16 %v471
    %v560 = vunpack.c.l.b16 %v472
    %v561 = vunpack.c.h.b16 %v472
    %v562 = vunpack.c.l.b16 %v473
    %v563 = vunpack.c.h.b16 %v473
    %v564 = vunpack.c.l.b16 %v474
    %v565 = vunpack.c.h.b16 %v474
    %v566 = vunpack.c.l.b16 %v475
    %v567 = vunpack.c.h.b16 %v475
    %v568 = vunpack.c.l.b16 %v476
    %v569 = vunpack.c.h.b16 %v476
    %v570 = vunpack.c.l.b16 %v477
    %v571 = vunpack.c.h.b16 %v477
    %v572 = vunpack.c.l.b16 %v478
    %v573 = vunpack.c.h.b16 %v478
    %v574 = vunpack.c.l.b16 %v479
    %v575 = vunpack.c.h.b16 %v479
    %v576 = vunpack.c.l.b16 %v480
    %v577 = vunpack.c.h.b16 %v480
    %v578 = vunpack.c.l.b16 %v481
    %v579 = vunpack.c.h.b16 %v481
    %v580 = vunpack.c.l.b16 %v482
    %v581 = vunpack.c.h.b16 %v482
    %v582 = vunpack.c.l.b16 %v483
    %v583 = vunpack.c.h.b16 %v483
    %v584 = vunpack.c.l.b16 %v484
    %v585 = vunpack.c.h.b16 %v484
    %v586 = vunpack.c.l.b16 %v485
    %v587 = vunpack.c.h.b16 %v485
    %v588 = vunpack.c.l.b16 %v486
    %v589 = vunpack.c.h.b16 %v486
    %v590 = vunpack.c.l.b16 %v487
    %v591 = vunpack.c.h.b16 %v487
    %v592 = vunpack.c.l.b16 %v488
    %v593 = vunpack.c.h.b16 %v488
    %v594 = vunpack.c.l.b16 %v489
    %v595 = vunpack.c.h.b16 %v489
    %v596 = vunpack.c.l.b16 %v490
    %v597 = vunpack.c.h.b16 %v490
    %v598 = vunpack.c.l.b16 %v491
    %v599 = vunpack.c.h.b16 %v491
    %v600 = vpack.c.b16 %v538, %v536
    %v601 = vpack.c.b16 %v539, %v537
    %v602 = vpack.c.b16 %v542, %v540
    %v603 = vpack.c.b16 %v543, %v541
    %v604 = vpack.c.b16 %v546, %v544
    %v605 = vpack.c.b16 %v547, %v545
    %v606 = vpack.c.b16 %v550, %v548
    %v607 = vpack.c.b16 %v551, %v549
    %v608 = vpack.c.b16 %v554, %v552
    %v609 = vpack.c.b16 %v555, %v553
    %v610 = vpack.c.b16 %v558, %v556
    %v611 = vpack.c.b16 %v559, %v557
    %v612 = vpack.c.b16 %v562, %v560
    %v613 = vpack.c.b16 %v563, %v561
    %v614 = vpack.c.b16 %v566, %v564
    %v615 = vpack.c.b16 %v567, %v565
    %v616 = vpack.c.b16 %v570, %v568
    %v617 = vpack.c.b16 %v571, %v569
    %v618 = vpack.c.b16 %v574, %v572
    %v619 = vpack.c.b16 %v575, %v573
    %v620 = vpack.c.b16 %v578, %v576
    %v621 = vpack.c.b16 %v579, %v577
    %v622 = vpack.c.b16 %v582, %v580
    %v623 = vpack.c.b16 %v583, %v581
    %v624 = vpack.c.b16 %v586, %v584
    %v625 = vpack.c.b16 %v587, %v585
    %v626 = vpack.c.b16 %v590, %v588
    %v627 = vpack.c.b16 %v591, %v589
    %v628 = vpack.c.b16 %v594, %v592
    %v629 = vpack.c.b16 %v595, %v593
    %v630 = vpack.c.b16 %v598, %v596
    %v631 = vpack.c.b16 %v599, %v597
    %664 = vmatprep.subr.bf16.mxu0 %v601
    %665 = vmatpush1.bf16.msra.mxu0 %v600
    %666 = vmatprep.subr.bf16.mxu0 %v603
    %667 = vmatpush1.bf16.msra.mxu0 %v602
    %668 = vmatprep.subr.bf16.mxu0 %v605
    %669 = vmatpush1.bf16.msra.mxu0 %v604
    %670 = vmatprep.subr.bf16.mxu0 %v607
    %671 = vmatpush1.bf16.msra.mxu0 %v606
    %672 = vmatprep.subr.bf16.mxu0 %v609
    %673 = vmatpush1.bf16.msra.mxu0 %v608
    %674 = vmatprep.subr.bf16.mxu0 %v611
    %675 = vmatpush1.bf16.msra.mxu0 %v610
    %676 = vmatprep.subr.bf16.mxu0 %v613
    %677 = vmatpush1.bf16.msra.mxu0 %v612
    %678 = vmatprep.subr.bf16.mxu0 %v615
    %679 = vmatpush1.bf16.msra.mxu0 %v614
    %680 = vmatprep.subr.bf16.mxu0 %v617
    %681 = vmatpush1.bf16.msra.mxu0 %v616
    %682 = vmatprep.subr.bf16.mxu0 %v619
    %683 = vmatpush1.bf16.msra.mxu0 %v618
    %684 = vmatprep.subr.bf16.mxu0 %v621
    %685 = vmatpush1.bf16.msra.mxu0 %v620
    %686 = vmatprep.subr.bf16.mxu0 %v623
    %687 = vmatpush1.bf16.msra.mxu0 %v622
    %688 = vmatprep.subr.bf16.mxu0 %v625
    %689 = vmatpush1.bf16.msra.mxu0 %v624
    %690 = vmatprep.subr.bf16.mxu0 %v627
    %691 = vmatpush1.bf16.msra.mxu0 %v626
    %692 = vmatprep.subr.bf16.mxu0 %v629
    %693 = vmatpush1.bf16.msra.mxu0 %v628
    %694 = vmatprep.subr.bf16.mxu0 %v631
    %695 = vmatpush1.bf16.msra.mxu0 %v630
    %696 = vmatprep.mubr.bf16.mxu0 %v212
    %697 = vmatmul.mubr.bf16.gmra.mrb[0].mxu0 %v211
    %v698 = vpop.f32.mrb[0].mxu0
    %v699 = vadd.f32 %v497, %v698
    %v700 = vpop.f32.mrb[0].mxu0
    %v701 = vadd.f32 %v501, %v700
    %v702 = vpop.f32.mrb[0].mxu0
    %v703 = vpop.f32.mrb[0].mxu0
    %704 = vdwg.mxu0
    %v705 = vmax.f32 %v699, 0.0
    %v706 = vmax.f32 %v701, 0.0
    %v707 = vld [vmem:[%s7] sm:$0x3]
    %v709 = vlaneseq
    %v710 = vshrl.u32 %v709, 7
    %v711 = vsub.s32 0, %v710
    %v712 = vrot.slane %v707, %v711
    %v713 = vlaneseq
    %v714 = vshrl.u32 %v713, 7
    %v715 = vsub.s32 1, %v714
    %v716 = vrot.slane %v707, %v715
    %v719 = vmul.f32 %v458, %v712
    %v720 = vmul.f32 %v459, %v716
    %v721 = vadd.f32 %v719, %v720
    %722 = vadd.xlane.f32.xlu0 %v721
    %v723 = vpop.xlane.xlu0 %722
    %v724 = vld [vmem:[#allocation2] sm:$0x1]
    %v726 = vlaneseq
    %v727 = vshrl.u32 %v726, 7
    %v728 = vsub.s32 0, %v727
    %v729 = vrot.slane %v724, %v728
    %v731 = vadd.f32 %v723, %v729
    %v732 = vld [vmem:[%s9] sm:$0x3]
    %v734 = vlaneseq
    %v735 = vshrl.u32 %v734, 7
    %v736 = vsub.s32 0, %v735
    %v737 = vrot.slane %v732, %v736
    %v738 = vlaneseq
    %v739 = vshrl.u32 %v738, 7
    %v740 = vsub.s32 1, %v739
    %v741 = vrot.slane %v732, %v740
    %v744 = vmul.f32 %v705, %v737
    %v745 = vmul.f32 %v706, %v741
    %v746 = vadd.f32 %v744, %v745
    %747 = vadd.xlane.f32.xlu0 %v746
    %v748 = vpop.xlane.xlu0 %747
    %v749 = vld [vmem:[#allocation3] sm:$0x1]
    %v751 = vlaneseq
    %v752 = vshrl.u32 %v751, 7
    %v753 = vsub.s32 0, %v752
    %v754 = vrot.slane %v749, %v753
    %v756 = vadd.f32 %v748, %v754
    %758 = vrot.lane.b32.xlu0 %v756, 1
    %v759 = vpop.permute.xlu0 %758
    %vm761 = vcmask 7168
    %v762 = vsel %vm761, %v731, %v759
    %vm763 = vcmask 15360
    %764 = vst.msk [vmem:[%s11] sm:$0xff] %vm763, %v762
    // Predicated region
    $region54: #{critic_forward.1} parent=1 // pred_check
      _
    $region55: #{critic_forward.1} parent=1 // pred_check_branch
      %766 = sbr.rel (0) target = $region57
    $region56: #{critic_forward.1} parent=1 // pred_region
      _
    $region57: #{critic_forward.1} parent=1 // pred_fallthru
      _
    // Predicated region
    $region58: #{critic_forward.1} parent=1 // pred_check
      _
    $region59: #{critic_forward.1} parent=1 // pred_check_branch
      %768 = sbr.rel (0) target = $region61
    $region60: #{critic_forward.1} parent=1 // pred_region
      _
    $region61: #{critic_forward.1} parent=1 // pred_fallthru
      _
    %769 = vsyncpa [#allocation5], 1
    %770 = vsyncpa [#allocation7], 1

</llo_original>
